<compile_context>
chip_gen: v7x
topology: tpu7x:2x2x1
jax: 0.10.0
libtpu: 0.0.40
codegen_flags: <defaults>
</compile_context>

<pallas_src>
import jax
import jax.numpy as jnp
from jax.experimental import pallas as pl
from jax.experimental.pallas import tpu as pltpu

_NEG_BIG = -1e30     # finite "-inf": masked / init paths never do inf-inf math
_H_CHUNK = 128       # hidden-dim chunk (one lane-width)


def _round_up(v, m):
    return (v + m - 1) // m * m


def _attn_pool_kernel(n_ref, x_ref, w1_ref, b1_ref, w2_ref, o_ref,
                      m_sc, z_sc, acc_sc, *, compute_dtype):
    bb, tn, d = x_ref.shape
    hp = w1_ref.shape[1]
    nk = pl.program_id(1)
    n_true = n_ref[0]

    @pl.when(nk == 0)
    def _():
        m_sc[...] = jnp.full_like(m_sc, _NEG_BIG)
        z_sc[...] = jnp.zeros_like(z_sc)
        acc_sc[...] = jnp.zeros_like(acc_sc)

    # validity of each instance (column) handled by this tile
    col = jax.lax.broadcasted_iota(jnp.int32, (bb, 1, tn), 2) + nk * tn
    valid = col < n_true                                       # (Bb, 1, tn)

    # Load x once; zero padded instance rows with a SELECT so garbage VMEM
    # (possibly NaN/Inf bit patterns from a partial edge block) can never
    # reach the MXU (0 * NaN would poison the weighted sum otherwise).
    x = x_ref[...]                                             # (Bb, tn, D)
    row_valid = (jax.lax.broadcasted_iota(jnp.int32, (bb, tn, 1), 1)
                 + nk * tn) < n_true
    x = jnp.where(row_valid, x, 0.0)

    # ---- attention scores, lane dense ------------------------------------
    # Linear1 on the MXU in compute_dtype (bf16 by default) with f32 accum;
    # the hidden dim is walked in 128-lane chunks so the live f32 tanh
    # intermediate stays small.  Linear2 is the flash-style q=1 einsum that
    # lands scores with the instance axis on lanes.
    xf = x.astype(compute_dtype).reshape(bb * tn, d)
    s = jnp.zeros((bb, 1, tn), jnp.float32)
    for c in range(hp // _H_CHUNK):
        lo = c * _H_CHUNK
        w1c = w1_ref[:, lo:lo + _H_CHUNK]                      # (D, 128)
        b1c = b1_ref[:, lo:lo + _H_CHUNK]                      # (1, 128) f32
        w2c = w2_ref[:, lo:lo + _H_CHUNK]                      # (1, 128) f32
        hc = jnp.tanh(
            jnp.dot(xf, w1c, preferred_element_type=jnp.float32) + b1c
        ).reshape(bb, tn, _H_CHUNK)                            # f32 (EUP)
        w2b = jnp.broadcast_to(w2c[None, :, :], (bb, 1, _H_CHUNK))
        s = s + jnp.einsum("bqh,bkh->bqk", w2b, hc,
                           preferred_element_type=jnp.float32)  # (Bb, 1, tn)

    s = jnp.where(valid, s, _NEG_BIG)

    # ---- online softmax over the instance axis ---------------------------
    m_prev = m_sc[...]                                         # (Bb, 1, 1)
    m_new = jnp.maximum(m_prev, jnp.max(s, axis=-1, keepdims=True))
    alpha = jnp.exp(m_prev - m_new)                            # (Bb, 1, 1)
    e = jnp.exp(s - m_new)                                     # (Bb, 1, tn)
    e = jnp.where(valid, e, 0.0)                               # belt & braces
    z_sc[...] = alpha * z_sc[...] + jnp.sum(e, axis=-1, keepdims=True)

    # unnormalized weighted sum on the MXU: (Bb,1,tn) @ (Bb,tn,D), f32 accum.
    # x is kept in its loaded dtype here (accuracy of the pooled features).
    u = jnp.einsum("bqk,bkd->bqd", e.astype(x.dtype), x,
                   preferred_element_type=jnp.float32)         # (Bb, 1, D)
    acc_sc[...] = alpha * acc_sc[...] + u
    m_sc[...] = m_new

    @pl.when(nk == pl.num_programs(1) - 1)
    def _():
        out = acc_sc[...] * pl.reciprocal(z_sc[...], approx=False)
        o_ref[...] = out[:, 0, :].astype(o_ref.dtype)          # lane-dense (Bb, D)


def attention_pooling(x, w1, b1, w2, b2=None, *,
                      block_b=8, block_n=None,
                      compute_dtype=jnp.bfloat16,
                      vmem_budget_bytes=40 * 1024 * 1024):
    """Pallas forward of AttentionPooling.

    x: (B, N, D); w1: (D, H); b1: (H,); w2: (H, 1) or (H,); b2 accepted for API
    compatibility only (softmax is shift invariant, so it cancels exactly).
    compute_dtype controls the MXU operand dtype of Linear1 (bf16 default,
    f32 accumulation); x is never re-materialized in HBM.  Returns (B, D).
    """
    B, N, D = x.shape
    H = w1.shape[1]
    del b2  # exact: constant logit bias cancels in softmax

    out_dtype = x.dtype
    x_bytes = jnp.dtype(x.dtype).itemsize
    comp_bytes = jnp.dtype(compute_dtype).itemsize
    out_bytes = jnp.dtype(out_dtype).itemsize

    # hidden dim lane-padded to the next multiple of 128 only (padded cols
    # contribute tanh(0)*0 = 0); biases / w2 row kept f32.
    Hp = _round_up(H, _H_CHUNK)
    w1p = jnp.zeros((D, Hp), compute_dtype).at[:, :H].set(w1.astype(compute_dtype))
    b1p = jnp.zeros((1, Hp), jnp.float32).at[:, :H].set(
        b1.reshape(1, H).astype(jnp.float32))
    w2p = jnp.zeros((1, Hp), jnp.float32).at[:, :H].set(
        w2.reshape(1, H).astype(jnp.float32))

    # ---- batch tile: never pad x on the host -------------------------------
    Bb = block_b if B >= block_b else B       # tiny B -> exact full block
    grid_b = pl.cdiv(B, Bb)

    # ---- N tile: sized against an explicit VMEM budget ---------------------
    n_sub = _round_up(N, 8)
    if block_n is None:
        # aim for ~2 MiB per x-tile buffer (bigger tiles when D is small,
        # which is where per-grid-step overhead dominates on v6e).
        target = 2 * 1024 * 1024
        tn = _round_up(max(1, target // max(1, Bb * D * x_bytes)), 128)
        tn = max(128, min(1024, tn))
    else:
        tn = _round_up(block_n, 8)
    tn = min(tn, n_sub)

    def _vmem_estimate(tn_):
        x_tile = Bb * tn_ * D * x_bytes                 # per pipeline buffer
        w1_res = D * Hp * comp_bytes
        h_live = 2 * Bb * tn_ * _H_CHUNK * 4            # pre/post-tanh f32 chunk
        xc_live = Bb * tn_ * D * comp_bytes             # in-VMEM cast of x
        acc = Bb * (D + 2) * 4
        small = 2 * Hp * 4 + Bb * D * out_bytes
        return 2 * x_tile + 2 * w1_res + h_live + xc_live + acc + 2 * small

    while _vmem_estimate(tn) > vmem_budget_bytes and tn > 128:
        tn = _round_up(max(128, tn // 2), 8)
    tn = min(tn, n_sub)

    # explicit scoped-VMEM limit: v5e's default is only 16 MiB, v7x physical
    # is 64 MiB -- keep the limit tied to actual need, capped conservatively.
    vmem_limit = int(min(max(_vmem_estimate(tn) + (8 << 20), 32 << 20), 48 << 20))

    grid = (grid_b, pl.cdiv(N, tn))
    n_arr = jnp.asarray([N], jnp.int32)

    import functools
    kernel = functools.partial(_attn_pool_kernel, compute_dtype=compute_dtype)

    out = pl.pallas_call(
        kernel,
        out_shape=jax.ShapeDtypeStruct((B, D), out_dtype),
        grid_spec=pltpu.PrefetchScalarGridSpec(
            num_scalar_prefetch=1,            # n_true lives in SMEM
            grid=grid,
            in_specs=[
                pl.BlockSpec((Bb, tn, D), lambda b, n, n_ref: (b, n, 0)),  # x
                pl.BlockSpec((D, Hp), lambda b, n, n_ref: (0, 0)),         # w1
                pl.BlockSpec((1, Hp), lambda b, n, n_ref: (0, 0)),         # b1
                pl.BlockSpec((1, Hp), lambda b, n, n_ref: (0, 0)),         # w2
            ],
            out_specs=pl.BlockSpec((Bb, D), lambda b, n, n_ref: (b, 0)),
            scratch_shapes=[
                pltpu.VMEM((Bb, 1, 1), jnp.float32),   # running max
                pltpu.VMEM((Bb, 1, 1), jnp.float32),   # running Z
                pltpu.VMEM((Bb, 1, D), jnp.float32),   # running weighted sum
            ],
        ),
        compiler_params=pltpu.CompilerParams(
            dimension_semantics=("parallel", "arbitrary"),
            vmem_limit_bytes=vmem_limit,
        ),
    )(n_arr, x, w1p, b1p, w2p)

    return out


def _reference(x, w1, b1, w2, b2):
    # pure-JAX reference of the PyTorch forward
    scores = jnp.tanh(x @ w1 + b1) @ w2 + b2        # (B, N, 1)
    attn = jax.nn.softmax(scores, axis=1)           # softmax over dim=1
    return jnp.sum(attn * x, axis=1)                # (B, D)


if __name__ == "__main__":
    B, N, D, H = 2, 10, 32, 32   # batch (bags), instances, input_dim, hidden_dim

    key = jax.random.PRNGKey(0)
    kx, kw1, kb1, kw2, kb2 = jax.random.split(key, 5)

    x = jax.random.normal(kx, (B, N, D), dtype=jnp.float32)
    w1 = jax.random.normal(kw1, (D, H), dtype=jnp.float32) * 0.1
    b1 = jax.random.normal(kb1, (H,), dtype=jnp.float32) * 0.1
    w2 = jax.random.normal(kw2, (H, 1), dtype=jnp.float32) * 0.1
    b2 = jax.random.normal(kb2, (1,), dtype=jnp.float32) * 0.1

    ref = _reference(x, w1, b1, w2, b2)

    # 1) exact-math path (f32 MXU) -- tight tolerance, exercises N edge mask
    out_f32 = jax.block_until_ready(
        attention_pooling(x, w1, b1, w2, b2, compute_dtype=jnp.float32))
    assert out_f32.shape == (B, D)
    assert jnp.allclose(out_f32, ref, atol=2e-5, rtol=2e-5), \
        float(jnp.max(jnp.abs(out_f32 - ref)))

    # 2) default path (bf16 Linear1 on the MXU, f32 accumulation)
    out_bf16 = jax.block_until_ready(attention_pooling(x, w1, b1, w2, b2))
    assert out_bf16.shape == (B, D)
    assert jnp.allclose(out_bf16, ref, atol=3e-2, rtol=3e-2), \
        float(jnp.max(jnp.abs(out_bf16 - ref)))

    # 3) multi-tile online softmax + non-divisible B and N edges (no host pad)
    B2, N2 = 9, 300
    x2 = jax.random.normal(kx, (B2, N2, D), dtype=jnp.float32)
    ref2 = _reference(x2, w1, b1, w2, b2)
    out2 = jax.block_until_ready(
        attention_pooling(x2, w1, b1, w2, b2, block_n=128,
                          compute_dtype=jnp.float32))
    assert out2.shape == (B2, D)
    assert jnp.allclose(out2, ref2, atol=2e-5, rtol=2e-5), \
        float(jnp.max(jnp.abs(out2 - ref2)))

    print("KERNEL_OK")
</pallas_src>

<mosaic_0001>
module attributes {stable_mosaic.version = 11 : i64} {
  func.func @_attn_pool_kernel(%arg0: i32, %arg1: i32, %arg2: memref<1xi32, #tpu.memory_space<smem>>, %arg3: memref<2x16x32xf32, #tpu.memory_space<vmem>>, %arg4: memref<32x128xf32, #tpu.memory_space<vmem>>, %arg5: memref<1x128xf32, #tpu.memory_space<vmem>>, %arg6: memref<1x128xf32, #tpu.memory_space<vmem>>, %arg7: memref<2x32xf32, #tpu.memory_space<vmem>>, %arg8: memref<2x1x1xf32, #tpu.memory_space<vmem>>, %arg9: memref<2x1x1xf32, #tpu.memory_space<vmem>>, %arg10: memref<2x1x32xf32, #tpu.memory_space<vmem>>) attributes {dimension_semantics = [#tpu.dimension_semantics<parallel>, #tpu.dimension_semantics<arbitrary>], iteration_bounds = array<i64: 1, 1>, scalar_prefetch = 1 : i64, scratch_operands = 3 : i64, tpu.core_type = #tpu.core_type<tc>, window_params = [{transform_indices = @transform_0, window_bounds = array<i64: 2, 16, 32>}, {pipeline_mode = #tpu.pipeline_mode<synchronous>, transform_indices = @transform_1, window_bounds = array<i64: 32, 128>}, {pipeline_mode = #tpu.pipeline_mode<synchronous>, transform_indices = @transform_2, window_bounds = array<i64: 1, 128>}, {pipeline_mode = #tpu.pipeline_mode<synchronous>, transform_indices = @transform_3, window_bounds = array<i64: 1, 128>}, {transform_indices = @transform_4, window_bounds = array<i64: 2, 32>}]} {
    %c0 = arith.constant 0 : index
    %0 = memref.load %arg2[%c0] : memref<1xi32, #tpu.memory_space<smem>>
    %c0_i32 = arith.constant 0 : i32
    %1 = arith.cmpi eq, %arg1, %c0_i32 : i32
    %2 = arith.extui %1 : i1 to i32
    %c0_i32_0 = arith.constant 0 : i32
    %3 = arith.cmpi ne, %2, %c0_i32_0 : i32
    scf.if %3 {
      %cst_39 = arith.constant -1.000000e+30 : f32
      %65 = vector.broadcast %cst_39 : f32 to vector<2x1x1xf32>
      %c0_40 = arith.constant 0 : index
      %c0_41 = arith.constant 0 : index
      %c0_42 = arith.constant 0 : index
      %66 = vector.load %arg8[%c0_40, %c0_41, %c0_42] : memref<2x1x1xf32, #tpu.memory_space<vmem>>, vector<2x1x1xf32>
      tpu.vector_store %arg8[%c0_40, %c0_41, %c0_42], %65 {strides = array<i32>} : memref<2x1x1xf32, #tpu.memory_space<vmem>>, vector<2x1x1xf32>,
      %cst_43 = arith.constant 0.000000e+00 : f32
      %67 = vector.broadcast %cst_43 : f32 to vector<2x1x1xf32>
      %c0_44 = arith.constant 0 : index
      %c0_45 = arith.constant 0 : index
      %c0_46 = arith.constant 0 : index
      %68 = vector.load %arg9[%c0_44, %c0_45, %c0_46] : memref<2x1x1xf32, #tpu.memory_space<vmem>>, vector<2x1x1xf32>
      tpu.vector_store %arg9[%c0_44, %c0_45, %c0_46], %67 {strides = array<i32>} : memref<2x1x1xf32, #tpu.memory_space<vmem>>, vector<2x1x1xf32>,
      %cst_47 = arith.constant 0.000000e+00 : f32
      %69 = vector.broadcast %cst_47 : f32 to vector<2x1x32xf32>
      %c0_48 = arith.constant 0 : index
      %c0_49 = arith.constant 0 : index
      %c0_50 = arith.constant 0 : index
      %70 = vector.load %arg10[%c0_48, %c0_49, %c0_50] : memref<2x1x32xf32, #tpu.memory_space<vmem>>, vector<2x1x32xf32>
      tpu.vector_store %arg10[%c0_48, %c0_49, %c0_50], %69 {strides = array<i32>} : memref<2x1x32xf32, #tpu.memory_space<vmem>>, vector<2x1x32xf32>,
    } else {
    }
    %4 = tpu.iota {dimensions = array<i32: 2>} : vector<2x1x16xi32>
    %c16_i32 = arith.constant 16 : i32
    %5 = arith.muli %arg1, %c16_i32 : i32
    %6 = vector.broadcast %5 : i32 to vector<2x1x16xi32>
    %7 = arith.addi %4, %6 : vector<2x1x16xi32>
    %8 = vector.broadcast %0 : i32 to vector<2x1x16xi32>
    %9 = arith.cmpi slt, %7, %8 : vector<2x1x16xi32>
    %c0_1 = arith.constant 0 : index
    %c0_2 = arith.constant 0 : index
    %c0_3 = arith.constant 0 : index
    %10 = vector.load %arg3[%c0_1, %c0_2, %c0_3] : memref<2x16x32xf32, #tpu.memory_space<vmem>>, vector<2x16x32xf32>
    %11 = tpu.iota {dimensions = array<i32: 1>} : vector<2x16x1xi32>
    %c16_i32_4 = arith.constant 16 : i32
    %12 = arith.muli %arg1, %c16_i32_4 : i32
    %13 = vector.broadcast %12 : i32 to vector<2x16x1xi32>
    %14 = arith.addi %11, %13 : vector<2x16x1xi32>
    %15 = vector.broadcast %0 : i32 to vector<2x16x1xi32>
    %16 = arith.cmpi slt, %14, %15 : vector<2x16x1xi32>
    %cst = arith.constant 0.000000e+00 : f32
    %17 = vector.shape_cast %16 : vector<2x16x1xi1> to vector<2x16x1xi1>
    %18 = vector.broadcast %17 : vector<2x16x1xi1> to vector<2x16x32xi1>
    %19 = vector.broadcast %cst : f32 to vector<2x16x32xf32>
    %20 = arith.select %18, %10, %19 : vector<2x16x32xi1>, vector<2x16x32xf32>
    %21 = vector.shape_cast %20 : vector<2x16x32xf32> to vector<32x32xf32>
    %cst_5 = arith.constant 0.000000e+00 : f32
    %22 = vector.broadcast %cst_5 : f32 to vector<2x1x16xf32>
    %c0_6 = arith.constant 0 : index
    %c0_7 = arith.constant 0 : index
    %23 = vector.load %arg4[%c0_6, %c0_7] : memref<32x128xf32, #tpu.memory_space<vmem>>, vector<32x128xf32>
    %c0_8 = arith.constant 0 : index
    %c0_9 = arith.constant 0 : index
    %24 = vector.load %arg5[%c0_8, %c0_9] : memref<1x128xf32, #tpu.memory_space<vmem>>, vector<1x128xf32>
    %c0_10 = arith.constant 0 : index
    %c0_11 = arith.constant 0 : index
    %25 = vector.load %arg6[%c0_10, %c0_11] : memref<1x128xf32, #tpu.memory_space<vmem>>, vector<1x128xf32>
    %cst_12 = arith.constant dense<0.000000e+00> : vector<32x128xf32>
    %26 = tpu.matmul %21, %23, %cst_12 {dimension_numbers = #tpu.dot_dimension_numbers<[1], [0], [0], [1], [0, 0, 1, 1], [], []>} : vector<32x32xf32>, vector<32x128xf32>, vector<32x128xf32> -> vector<32x128xf32>
    %27 = vector.broadcast %24 : vector<1x128xf32> to vector<32x128xf32>
    %28 = arith.addf %26, %27 : vector<32x128xf32>
    %29 = math.tanh %28 : vector<32x128xf32>
    %30 = vector.shape_cast %29 : vector<32x128xf32> to vector<2x16x128xf32>
    %31 = vector.shape_cast %25 : vector<1x128xf32> to vector<1x1x128xf32>
    %32 = vector.shape_cast %31 : vector<1x1x128xf32> to vector<1x1x128xf32>
    %33 = vector.broadcast %32 : vector<1x1x128xf32> to vector<2x1x128xf32>
    "tpu.trace_start"() <{level = 10 : i32, message = "bqh,bkh->bqk"}> : () -> ()
    %cst_13 = arith.constant dense<0.000000e+00> : vector<2x1x16xf32>
    %34 = tpu.matmul %33, %30, %cst_13 {dimension_numbers = #tpu.dot_dimension_numbers<[2], [2], [1], [1], [0, 0, 0, 1, 1, 1], [0], [0]>} : vector<2x1x128xf32>, vector<2x16x128xf32>, vector<2x1x16xf32> -> vector<2x1x16xf32>
    "tpu.trace_stop"() : () -> ()
    %35 = arith.addf %22, %34 : vector<2x1x16xf32>
    %cst_14 = arith.constant -1.000000e+30 : f32
    %36 = vector.broadcast %cst_14 : f32 to vector<2x1x16xf32>
    %37 = arith.select %9, %35, %36 : vector<2x1x16xi1>, vector<2x1x16xf32>
    %c0_15 = arith.constant 0 : index
    %c0_16 = arith.constant 0 : index
    %c0_17 = arith.constant 0 : index
    %38 = vector.load %arg8[%c0_15, %c0_16, %c0_17] : memref<2x1x1xf32, #tpu.memory_space<vmem>>, vector<2x1x1xf32>
    %cst_18 = arith.constant dense<0xFF800000> : vector<2x1xf32>
    %39 = vector.multi_reduction <maximumf>, %37, %cst_18 [2] : vector<2x1x16xf32> to vector<2x1xf32>
    %40 = vector.shape_cast %39 : vector<2x1xf32> to vector<2x1x1xf32>
    %41 = arith.maximumf %38, %40 : vector<2x1x1xf32>
    %42 = arith.subf %38, %41 : vector<2x1x1xf32>
    %43 = math.exp %42 : vector<2x1x1xf32>
    %44 = vector.broadcast %41 : vector<2x1x1xf32> to vector<2x1x16xf32>
    %45 = arith.subf %37, %44 : vector<2x1x16xf32>
    %46 = math.exp %45 : vector<2x1x16xf32>
    %cst_19 = arith.constant 0.000000e+00 : f32
    %47 = vector.broadcast %cst_19 : f32 to vector<2x1x16xf32>
    %48 = arith.select %9, %46, %47 : vector<2x1x16xi1>, vector<2x1x16xf32>
    %c0_20 = arith.constant 0 : index
    %c0_21 = arith.constant 0 : index
    %c0_22 = arith.constant 0 : index
    %49 = vector.load %arg9[%c0_20, %c0_21, %c0_22] : memref<2x1x1xf32, #tpu.memory_space<vmem>>, vector<2x1x1xf32>
    %50 = arith.mulf %43, %49 : vector<2x1x1xf32>
    %cst_23 = arith.constant dense<0.000000e+00> : vector<2x1xf32>
    %51 = vector.multi_reduction <add>, %48, %cst_23 [2] : vector<2x1x16xf32> to vector<2x1xf32>
    %52 = vector.shape_cast %51 : vector<2x1xf32> to vector<2x1x1xf32>
    %53 = arith.addf %50, %52 : vector<2x1x1xf32>
    %c0_24 = arith.constant 0 : index
    %c0_25 = arith.constant 0 : index
    %c0_26 = arith.constant 0 : index
    %54 = vector.load %arg9[%c0_24, %c0_25, %c0_26] : memref<2x1x1xf32, #tpu.memory_space<vmem>>, vector<2x1x1xf32>
    tpu.vector_store %arg9[%c0_24, %c0_25, %c0_26], %53 {strides = array<i32>} : memref<2x1x1xf32, #tpu.memory_space<vmem>>, vector<2x1x1xf32>,
    "tpu.trace_start"() <{level = 10 : i32, message = "bqk,bkd->bqd"}> : () -> ()
    %cst_27 = arith.constant dense<0.000000e+00> : vector<2x1x32xf32>
    %55 = tpu.matmul %48, %20, %cst_27 {dimension_numbers = #tpu.dot_dimension_numbers<[2], [1], [1], [2], [0, 0, 0, 1, 1, 2], [0], [0]>} : vector<2x1x16xf32>, vector<2x16x32xf32>, vector<2x1x32xf32> -> vector<2x1x32xf32>
    "tpu.trace_stop"() : () -> ()
    %c0_28 = arith.constant 0 : index
    %c0_29 = arith.constant 0 : index
    %c0_30 = arith.constant 0 : index
    %56 = vector.load %arg10[%c0_28, %c0_29, %c0_30] : memref<2x1x32xf32, #tpu.memory_space<vmem>>, vector<2x1x32xf32>
    %57 = vector.broadcast %43 : vector<2x1x1xf32> to vector<2x1x32xf32>
    %58 = arith.mulf %57, %56 : vector<2x1x32xf32>
    %59 = arith.addf %58, %55 : vector<2x1x32xf32>
    %c0_31 = arith.constant 0 : index
    %c0_32 = arith.constant 0 : index
    %c0_33 = arith.constant 0 : index
    %60 = vector.load %arg10[%c0_31, %c0_32, %c0_33] : memref<2x1x32xf32, #tpu.memory_space<vmem>>, vector<2x1x32xf32>
    tpu.vector_store %arg10[%c0_31, %c0_32, %c0_33], %59 {strides = array<i32>} : memref<2x1x32xf32, #tpu.memory_space<vmem>>, vector<2x1x32xf32>,
    %c0_34 = arith.constant 0 : index
    %c0_35 = arith.constant 0 : index
    %c0_36 = arith.constant 0 : index
    %61 = vector.load %arg8[%c0_34, %c0_35, %c0_36] : memref<2x1x1xf32, #tpu.memory_space<vmem>>, vector<2x1x1xf32>
    tpu.vector_store %arg8[%c0_34, %c0_35, %c0_36], %41 {strides = array<i32>} : memref<2x1x1xf32, #tpu.memory_space<vmem>>, vector<2x1x1xf32>,
    %c0_i32_37 = arith.constant 0 : i32
    %62 = arith.cmpi eq, %arg1, %c0_i32_37 : i32
    %63 = arith.extui %62 : i1 to i32
    %c0_i32_38 = arith.constant 0 : i32
    %64 = arith.cmpi ne, %63, %c0_i32_38 : i32
    scf.if %64 {
      %c0_39 = arith.constant 0 : index
      %c0_40 = arith.constant 0 : index
      %c0_41 = arith.constant 0 : index
      %65 = vector.load %arg10[%c0_39, %c0_40, %c0_41] : memref<2x1x32xf32, #tpu.memory_space<vmem>>, vector<2x1x32xf32>
      %c0_42 = arith.constant 0 : index
      %c0_43 = arith.constant 0 : index
      %c0_44 = arith.constant 0 : index
      %66 = vector.load %arg9[%c0_42, %c0_43, %c0_44] : memref<2x1x1xf32, #tpu.memory_space<vmem>>, vector<2x1x1xf32>
      %67 = tpu.reciprocal %66 : vector<2x1x1xf32> -> vector<2x1x1xf32>
      %68 = vector.broadcast %67 : vector<2x1x1xf32> to vector<2x1x32xf32>
      %69 = arith.mulf %65, %68 : vector<2x1x32xf32>
      %70 = vector.shape_cast %69 : vector<2x1x32xf32> to vector<2x32xf32>
      %c0_45 = arith.constant 0 : index
      %c0_46 = arith.constant 0 : index
      %71 = vector.load %arg7[%c0_45, %c0_46] : memref<2x32xf32, #tpu.memory_space<vmem>>, vector<2x32xf32>
      tpu.vector_store %arg7[%c0_45, %c0_46], %70 {strides = array<i32>} : memref<2x32xf32, #tpu.memory_space<vmem>>, vector<2x32xf32>,
    } else {
    }
    return
  }
  func.func @transform_0(%arg0: i32, %arg1: i32, %arg2: memref<1xi32, #tpu.memory_space<smem>>) -> (i32, i32, i32) {
    %c0_i32 = arith.constant 0 : i32
    %c0_i32_0 = arith.constant 0 : i32
    return %arg0, %arg1, %c0_i32 : i32, i32, i32
  }
  func.func @transform_1(%arg0: i32, %arg1: i32, %arg2: memref<1xi32, #tpu.memory_space<smem>>) -> (i32, i32) {
    %c0_i32 = arith.constant 0 : i32
    %c0_i32_0 = arith.constant 0 : i32
    %c0_i32_1 = arith.constant 0 : i32
    return %c0_i32, %c0_i32_0 : i32, i32
  }
  func.func @transform_2(%arg0: i32, %arg1: i32, %arg2: memref<1xi32, #tpu.memory_space<smem>>) -> (i32, i32) {
    %c0_i32 = arith.constant 0 : i32
    %c0_i32_0 = arith.constant 0 : i32
    %c0_i32_1 = arith.constant 0 : i32
    return %c0_i32, %c0_i32_0 : i32, i32
  }
  func.func @transform_3(%arg0: i32, %arg1: i32, %arg2: memref<1xi32, #tpu.memory_space<smem>>) -> (i32, i32) {
    %c0_i32 = arith.constant 0 : i32
    %c0_i32_0 = arith.constant 0 : i32
    %c0_i32_1 = arith.constant 0 : i32
    return %c0_i32, %c0_i32_0 : i32, i32
  }
  func.func @transform_4(%arg0: i32, %arg1: i32, %arg2: memref<1xi32, #tpu.memory_space<smem>>) -> (i32, i32) {
    %c0_i32 = arith.constant 0 : i32
    %c0_i32_0 = arith.constant 0 : i32
    return %arg0, %c0_i32 : i32, i32
  }
}

</mosaic_0001>

<llo_original>
// kernel: tpu_custom_call.1
$region0: #{tpu_custom_call.1}
  #allocation0 [shape = 'u32[]', space=smem, size = 0x4, offset = 0x4, fixed_abs, tag = 'smem constant byte address 0x4 - core index']
  #allocation1 [shape = 'u32[144,128]{1,0:T(1,128)}', space=vmem, size = 0x12000, scoped, tag = 'internal scratch']
  #allocation2 [shape = 'f32[2,1,1]{2,1,0:T(1,128)}', space=vmem, size = 0x400, scoped, tag = 'scratch operand']
  #allocation3 [shape = 'f32[2,1,1]{2,1,0:T(1,128)}', space=vmem, size = 0x400, scoped, tag = 'scratch operand']
  #allocation4 [shape = 'f32[2,1,32]{2,1,0:T(1,128)}', space=vmem, size = 0x400, scoped, tag = 'scratch operand']
  #allocation5 [shape = 's32[1]{0}', space=sflag, size = 0x4, scoped, tag = 'scoped memory for tpu_custom_call.1']
  #allocation6 [shape = 's32[1]{0:T(128)S(6)}', space=smem, size = 0x200, scoped, tag = 'prefetched SMEM operand 0']
  %s0 = inlined_call_operand.<no memory space> [shape: s32[1], index: 0, kind: input, shape index: {}]
  %s1 = inlined_call_operand.vmem [shape: f32[2,10,32], index: 1, kind: input, shape index: {}]
  %s2 = inlined_call_operand.vmem [shape: f32[32,128], index: 2, kind: input, shape index: {}]
  %s3 = inlined_call_operand.vmem [shape: f32[1,128], index: 3, kind: input, shape index: {}]
  %s4 = inlined_call_operand.vmem [shape: f32[1,128], index: 4, kind: input, shape index: {}]
  %s5 = inlined_call_operand.hbm [shape: f32[2,32], index: 5, kind: output, shape index: {}]
  %s6 = sld [smem:[#allocation0]]
  $region34: #{tpu_custom_call.1} parent=0
    _
  %s8 = ssub.s32 1, %s6
  %s9 = scalar_select 0, %s8, %s6
  %10 = sst [smem:[#allocation6]] %s0
  $region1: #{tpu_custom_call.1} parent=0
    #allocation7 [shape = 'u8[1024]{0}', space=vmem, size = 0x400, scoped, tag = 'output window, operand 0, single buffered']
    #allocation8 [shape = 's32[1]{0}', space=sflag, size = 0x4, scoped, tag = 'scoped memory for tpu_custom_call.1']
    %11 = vsyncpa [#allocation8], 0
    // Predicated region
    $region2: #{tpu_custom_call.1} parent=1 // pred_check
      _
    $region3: #{tpu_custom_call.1} parent=1 // pred_check_branch
      %13 = sbr.rel (0) target = $region5
    $region4: #{tpu_custom_call.1} parent=1 // pred_region
      _
    $region5: #{tpu_custom_call.1} parent=1 // pred_fallthru
      _
    // Predicated region
    $region6: #{tpu_custom_call.1} parent=1 // pred_check
      _
    $region7: #{tpu_custom_call.1} parent=1 // pred_check_branch
      %15 = sbr.rel (0) target = $region9
    $region8: #{tpu_custom_call.1} parent=1 // pred_region
      _
    $region9: #{tpu_custom_call.1} parent=1 // pred_fallthru
      _
    // Predicated region
    $region10: #{tpu_custom_call.1} parent=1 // pred_check
      _
    $region11: #{tpu_custom_call.1} parent=1 // pred_check_branch
      %17 = sbr.rel (0) target = $region13
    $region12: #{tpu_custom_call.1} parent=1 // pred_region
      _
    $region13: #{tpu_custom_call.1} parent=1 // pred_fallthru
      _
    // Predicated region
    $region14: #{tpu_custom_call.1} parent=1 // pred_check
      _
    $region15: #{tpu_custom_call.1} parent=1 // pred_check_branch
      %19 = sbr.rel (0) target = $region17
    $region16: #{tpu_custom_call.1} parent=1 // pred_region
      _
    $region17: #{tpu_custom_call.1} parent=1 // pred_fallthru
      _
    %s20 = sld [smem:[#allocation6]]
    %p21 = scmp.eq.s32.totalorder 0, 0
    // Predicated region
    $region18: #{tpu_custom_call.1} parent=1 // pred_check
      %p22 = pneg %p21
    $region19: #{tpu_custom_call.1} parent=1 // pred_check_branch
      %24 = sbr.rel (%p22) target = $region21
    $region20: #{tpu_custom_call.1} parent=1 // pred_region
      %vm25 = vcmask 0
      %26 = vst.msk [vmem:[#allocation2] sm:$0x1] %vm25, -1e+30
      %27 = vst.msk [vmem:[#allocation2 + $0x1] sm:$0x1] %vm25, -1e+30
      %28 = vst.msk [vmem:[#allocation3] sm:$0x1] %vm25, 0.0
      %29 = vst.msk [vmem:[#allocation3 + $0x1] sm:$0x1] %vm25, 0.0
      %vm30 = vcmask 253952
      %31 = vst.msk [vmem:[#allocation4] sm:$0x1] %vm30, 0.0
      %32 = vst.msk [vmem:[#allocation4 + $0x1] sm:$0x1] %vm30, 0.0
    $region21: #{tpu_custom_call.1} parent=1 // pred_fallthru
      _
    %v33 = vlaneseq
    %v34 = vand.u32 %v33, 127
    %s35 = smul.u32 0, 16
    %v36 = vstv %s35
    %v37 = vadd.s32 %v34, %v36
    %v38 = vstv %s20
    %vm39 = vcmp.lt.s32.totalorder %v37, %v38
    %v40 = vld [vmem:[%s1] sm:$0xff]
    %v41 = vld [vmem:[%s1 + $0x8] sm:$0xff]
    %v42 = vld [vmem:[%s1 + $0x10] sm:$0xff]
    %v43 = vld [vmem:[%s1 + $0x18] sm:$0xff]
    %v44 = vlaneseq
    %v45 = vshrl.u32 %v44, 7
    %v46 = vadd.s32 %v45, 8
    %v47 = vadd.s32 %v45, %v36
    %v48 = vadd.s32 %v46, %v36
    %vm49 = vcmp.lt.s32.totalorder %v47, %v38
    %vm50 = vcmp.lt.s32.totalorder %v48, %v38
    %v51 = vsel %vm49, 1, 0
    %v52 = vsel %vm50, 1, 0
    %vm53 = vcmp.eq.s32.totalorder %v51, 1
    %vm54 = vcmp.eq.s32.totalorder %v52, 1
    %v55 = vsel %vm53, %v40, 0.0
    %v56 = vsel %vm54, %v41, 0.0
    %v57 = vsel %vm53, %v42, 0.0
    %v58 = vsel %vm54, %v43, 0.0
    %v59 = vld [vmem:[%s2] sm:$0xff]
    %v60 = vld [vmem:[%s2 + $0x8] sm:$0xff]
    %v61 = vld [vmem:[%s2 + $0x10] sm:$0xff]
    %v62 = vld [vmem:[%s2 + $0x18] sm:$0xff]
    %v63 = vld [vmem:[%s3] sm:$0x1]
    %v64 = vld [vmem:[%s4] sm:$0x1]
    %v66 = vlaneseq
    %v67 = vshrl.u32 %v66, 7
    %v68 = vsub.s32 0, %v67
    %v69 = vrot.slane %v63, %v68
    %vm71 = vcmask 261120
    %v73 = vsel %vm71, %v55, 0
    %v76 = vsel %vm71, %v56, 0
    %v79 = vsel %vm71, %v57, 0
    %v82 = vsel %vm71, %v58, 0
    %84 = vmatprep.subr.mxu0 0.0
    %85 = vmatpush1.msra.mxu0 %v59
    %86 = vmatprep.subr.mxu0 0.0
    %87 = vmatpush1.msra.mxu0 %v60
    %88 = vmatprep.subr.mxu0 0.0
    %89 = vmatpush1.msra.mxu0 %v61
    %90 = vmatprep.subr.mxu0 0.0
    %91 = vmatpush1.msra.mxu0 %v62
    %92 = vmatprep.subr.mxu0 0.0
    %93 = vmatpush1.msra.mxu0 0.0
    %94 = vmatprep.subr.mxu0 0.0
    %95 = vmatpush1.msra.mxu0 0.0
    %96 = vmatprep.subr.mxu0 0.0
    %97 = vmatpush1.msra.mxu0 0.0
    %98 = vmatprep.subr.mxu0 0.0
    %99 = vmatpush1.msra.mxu0 0.0
    %100 = vmatprep.subr.mxu0 0.0
    %101 = vmatpush1.msra.mxu0 0.0
    %102 = vmatprep.subr.mxu0 0.0
    %103 = vmatpush1.msra.mxu0 0.0
    %104 = vmatprep.subr.mxu0 0.0
    %105 = vmatpush1.msra.mxu0 0.0
    %106 = vmatprep.subr.mxu0 0.0
    %107 = vmatpush1.msra.mxu0 0.0
    %108 = vmatprep.subr.mxu0 0.0
    %109 = vmatpush1.msra.mxu0 0.0
    %110 = vmatprep.subr.mxu0 0.0
    %111 = vmatpush1.msra.mxu0 0.0
    %112 = vmatprep.subr.mxu0 0.0
    %113 = vmatpush1.msra.mxu0 0.0
    %114 = vmatprep.subr.mxu0 0.0
    %115 = vmatpush1.msra.mxu0 0.0
    %116 = vmatprep.subr.mxu0 0.0
    %117 = vmatpush1.msra.mxu0 0.0
    %118 = vmatprep.subr.mxu0 0.0
    %119 = vmatpush1.msra.mxu0 0.0
    %120 = vmatprep.subr.mxu0 0.0
    %121 = vmatpush1.msra.mxu0 0.0
    %122 = vmatprep.subr.mxu0 0.0
    %123 = vmatpush1.msra.mxu0 0.0
    %124 = vmatprep.subr.mxu0 0.0
    %125 = vmatpush1.msra.mxu0 0.0
    %126 = vmatprep.subr.mxu0 0.0
    %127 = vmatpush1.msra.mxu0 0.0
    %128 = vmatprep.subr.mxu0 0.0
    %129 = vmatpush1.msra.mxu0 0.0
    %130 = vmatprep.subr.mxu0 0.0
    %131 = vmatpush1.msra.mxu0 0.0
    %132 = vmatprep.subr.mxu0 0.0
    %133 = vmatpush1.msra.mxu0 0.0
    %134 = vmatprep.subr.mxu0 0.0
    %135 = vmatpush1.msra.mxu0 0.0
    %136 = vmatprep.subr.mxu0 0.0
    %137 = vmatpush1.msra.mxu0 0.0
    %138 = vmatprep.subr.mxu0 0.0
    %139 = vmatpush1.msra.mxu0 0.0
    %140 = vmatprep.subr.mxu0 0.0
    %141 = vmatpush1.msra.mxu0 0.0
    %142 = vmatprep.subr.mxu0 0.0
    %143 = vmatpush1.msra.mxu0 0.0
    %144 = vmatprep.subr.mxu0 0.0
    %145 = vmatpush1.msra.mxu0 0.0
    %146 = vmatprep.subr.mxu0 0.0
    %147 = vmatpush1.msra.mxu0 0.0
    %148 = vmatprep.mubr.f32.mxu0 0.0
    %149 = vmatmul.mubr.f32.gmra.mrb[0].mxu0 %v73
    %v150 = vpop.f32.mrb[0].mxu0
    %v151 = vadd.f32 %v69, %v150
    %v152 = vpop.f32.mrb[0].mxu0
    %153 = vmatprep.mubr.f32.mxu0 0.0
    %154 = vmatmul.mubr.f32.gmra.mrb[0].mxu0 %v76
    %v155 = vpop.f32.mrb[0].mxu0
    %v156 = vadd.f32 %v69, %v155
    %v157 = vpop.f32.mrb[0].mxu0
    %158 = vmatprep.mubr.f32.mxu0 0.0
    %159 = vmatmul.mubr.f32.gmra.mrb[0].mxu0 %v79
    %v160 = vpop.f32.mrb[0].mxu0
    %v161 = vadd.f32 %v69, %v160
    %v162 = vpop.f32.mrb[0].mxu0
    %163 = vmatprep.mubr.f32.mxu0 0.0
    %164 = vmatmul.mubr.f32.gmra.mrb[0].mxu0 %v82
    %v165 = vpop.f32.mrb[0].mxu0
    %v166 = vadd.f32 %v69, %v165
    %v167 = vpop.f32.mrb[0].mxu0
    %168 = vdwg.mxu0
    %v169 = vtanh.pop %v151
    %v170 = vtanh.pop %v156
    %v171 = vtanh.pop %v161
    %v172 = vtanh.pop %v166
    %173 = vmatprep.subr.mxu0 0.0
    %174 = vmatpush1.xpose.msra.mxu0 %v169
    %175 = vmatprep.subr.mxu0 0.0
    %176 = vmatpush1.xpose.msra.mxu0 %v170
    %177 = vmatprep.subr.mxu0 0.0
    %178 = vmatpush1.xpose.msra.mxu0 0.0
    %179 = vmatprep.subr.mxu0 0.0
    %180 = vmatpush1.xpose.msra.mxu0 0.0
    %181 = vmatprep.subr.mxu0 0.0
    %182 = vmatpush1.xpose.msra.mxu0 0.0
    %183 = vmatprep.subr.mxu0 0.0
    %184 = vmatpush1.xpose.msra.mxu0 0.0
    %185 = vmatprep.subr.mxu0 0.0
    %186 = vmatpush1.xpose.msra.mxu0 0.0
    %187 = vmatprep.subr.mxu0 0.0
    %188 = vmatpush1.xpose.msra.mxu0 0.0
    %189 = vmatprep.subr.mxu0 0.0
    %190 = vmatpush1.xpose.msra.mxu0 0.0
    %191 = vmatprep.subr.mxu0 0.0
    %192 = vmatpush1.xpose.msra.mxu0 0.0
    %193 = vmatprep.subr.mxu0 0.0
    %194 = vmatpush1.xpose.msra.mxu0 0.0
    %195 = vmatprep.subr.mxu0 0.0
    %196 = vmatpush1.xpose.msra.mxu0 0.0
    %197 = vmatprep.subr.mxu0 0.0
    %198 = vmatpush1.xpose.msra.mxu0 0.0
    %199 = vmatprep.subr.mxu0 0.0
    %200 = vmatpush1.xpose.msra.mxu0 0.0
    %201 = vmatprep.subr.mxu0 0.0
    %202 = vmatpush1.xpose.msra.mxu0 0.0
    %203 = vmatprep.subr.mxu0 0.0
    %204 = vmatpush1.xpose.msra.mxu0 0.0
    %205 = vmatprep.subr.mxu0 0.0
    %206 = vmatpush1.xpose.msra.mxu0 0.0
    %207 = vmatprep.subr.mxu0 0.0
    %208 = vmatpush1.xpose.msra.mxu0 0.0
    %209 = vmatprep.subr.mxu0 0.0
    %210 = vmatpush1.xpose.msra.mxu0 0.0
    %211 = vmatprep.subr.mxu0 0.0
    %212 = vmatpush1.xpose.msra.mxu0 0.0
    %213 = vmatprep.subr.mxu0 0.0
    %214 = vmatpush1.xpose.msra.mxu0 0.0
    %215 = vmatprep.subr.mxu0 0.0
    %216 = vmatpush1.xpose.msra.mxu0 0.0
    %217 = vmatprep.subr.mxu0 0.0
    %218 = vmatpush1.xpose.msra.mxu0 0.0
    %219 = vmatprep.subr.mxu0 0.0
    %220 = vmatpush1.xpose.msra.mxu0 0.0
    %221 = vmatprep.subr.mxu0 0.0
    %222 = vmatpush1.xpose.msra.mxu0 0.0
    %223 = vmatprep.subr.mxu0 0.0
    %224 = vmatpush1.xpose.msra.mxu0 0.0
    %225 = vmatprep.subr.mxu0 0.0
    %226 = vmatpush1.xpose.msra.mxu0 0.0
    %227 = vmatprep.subr.mxu0 0.0
    %228 = vmatpush1.xpose.msra.mxu0 0.0
    %229 = vmatprep.subr.mxu0 0.0
    %230 = vmatpush1.xpose.msra.mxu0 0.0
    %231 = vmatprep.subr.mxu0 0.0
    %232 = vmatpush1.xpose.msra.mxu0 0.0
    %233 = vmatprep.subr.mxu0 0.0
    %234 = vmatpush1.xpose.msra.mxu0 0.0
    %235 = vmatprep.subr.mxu0 0.0
    %236 = vmatpush1.xpose.msra.mxu0 0.0
    %237 = vmatprep.mubr.f32.mxu0 0.0
    %238 = vmatmul.mubr.f32.gmra.mrb[0].mxu0 %v64
    %v239 = vpop.f32.mrb[0].mxu0
    %v240 = vadd.f32 0.0, %v239
    %v241 = vpop.f32.mrb[0].mxu0
    %242 = vdwg.mxu0
    %243 = vmatprep.subr.mxu0 0.0
    %244 = vmatpush1.xpose.msra.mxu0 %v171
    %245 = vmatprep.subr.mxu0 0.0
    %246 = vmatpush1.xpose.msra.mxu0 %v172
    %247 = vmatprep.subr.mxu0 0.0
    %248 = vmatpush1.xpose.msra.mxu0 0.0
    %249 = vmatprep.subr.mxu0 0.0
    %250 = vmatpush1.xpose.msra.mxu0 0.0
    %251 = vmatprep.subr.mxu0 0.0
    %252 = vmatpush1.xpose.msra.mxu0 0.0
    %253 = vmatprep.subr.mxu0 0.0
    %254 = vmatpush1.xpose.msra.mxu0 0.0
    %255 = vmatprep.subr.mxu0 0.0
    %256 = vmatpush1.xpose.msra.mxu0 0.0
    %257 = vmatprep.subr.mxu0 0.0
    %258 = vmatpush1.xpose.msra.mxu0 0.0
    %259 = vmatprep.subr.mxu0 0.0
    %260 = vmatpush1.xpose.msra.mxu0 0.0
    %261 = vmatprep.subr.mxu0 0.0
    %262 = vmatpush1.xpose.msra.mxu0 0.0
    %263 = vmatprep.subr.mxu0 0.0
    %264 = vmatpush1.xpose.msra.mxu0 0.0
    %265 = vmatprep.subr.mxu0 0.0
    %266 = vmatpush1.xpose.msra.mxu0 0.0
    %267 = vmatprep.subr.mxu0 0.0
    %268 = vmatpush1.xpose.msra.mxu0 0.0
    %269 = vmatprep.subr.mxu0 0.0
    %270 = vmatpush1.xpose.msra.mxu0 0.0
    %271 = vmatprep.subr.mxu0 0.0
    %272 = vmatpush1.xpose.msra.mxu0 0.0
    %273 = vmatprep.subr.mxu0 0.0
    %274 = vmatpush1.xpose.msra.mxu0 0.0
    %275 = vmatprep.subr.mxu0 0.0
    %276 = vmatpush1.xpose.msra.mxu0 0.0
    %277 = vmatprep.subr.mxu0 0.0
    %278 = vmatpush1.xpose.msra.mxu0 0.0
    %279 = vmatprep.subr.mxu0 0.0
    %280 = vmatpush1.xpose.msra.mxu0 0.0
    %281 = vmatprep.subr.mxu0 0.0
    %282 = vmatpush1.xpose.msra.mxu0 0.0
    %283 = vmatprep.subr.mxu0 0.0
    %284 = vmatpush1.xpose.msra.mxu0 0.0
    %285 = vmatprep.subr.mxu0 0.0
    %286 = vmatpush1.xpose.msra.mxu0 0.0
    %287 = vmatprep.subr.mxu0 0.0
    %288 = vmatpush1.xpose.msra.mxu0 0.0
    %289 = vmatprep.subr.mxu0 0.0
    %290 = vmatpush1.xpose.msra.mxu0 0.0
    %291 = vmatprep.subr.mxu0 0.0
    %292 = vmatpush1.xpose.msra.mxu0 0.0
    %293 = vmatprep.subr.mxu0 0.0
    %294 = vmatpush1.xpose.msra.mxu0 0.0
    %295 = vmatprep.subr.mxu0 0.0
    %296 = vmatpush1.xpose.msra.mxu0 0.0
    %297 = vmatprep.subr.mxu0 0.0
    %298 = vmatpush1.xpose.msra.mxu0 0.0
    %299 = vmatprep.subr.mxu0 0.0
    %300 = vmatpush1.xpose.msra.mxu0 0.0
    %301 = vmatprep.subr.mxu0 0.0
    %302 = vmatpush1.xpose.msra.mxu0 0.0
    %303 = vmatprep.subr.mxu0 0.0
    %304 = vmatpush1.xpose.msra.mxu0 0.0
    %305 = vmatprep.subr.mxu0 0.0
    %306 = vmatpush1.xpose.msra.mxu0 0.0
    %307 = vmatprep.mubr.f32.mxu0 0.0
    %308 = vmatmul.mubr.f32.gmra.mrb[0].mxu0 %v64
    %v309 = vpop.f32.mrb[0].mxu0
    %v310 = vadd.f32 0.0, %v309
    %v311 = vpop.f32.mrb[0].mxu0
    %312 = vdwg.mxu0
    %v313 = vsel %vm39, %v240, -1e+30
    %v314 = vsel %vm39, %v310, -1e+30
    %v315 = vld [vmem:[#allocation2] sm:$0x1]
    %v316 = vld [vmem:[#allocation2 + $0x1] sm:$0x1]
    %vm317 = vcmask 122880
    %v318 = vsel %vm317, %v313, -inf
    %319 = vmax.xlane.f32.xlu0 %v318
    %v320 = vpop.xlane.xlu0 %319
    %v321 = vsel %vm317, %v314, -inf
    %322 = vmax.xlane.f32.xlu0 %v321
    %v323 = vpop.xlane.xlu0 %322
    %v324 = vmax.f32 %v315, %v320
    %v325 = vmax.f32 %v316, %v323
    %v326 = vsub.f32 %v315, %v324
    %v327 = vsub.f32 %v316, %v325
    %v328 = vmul.f32 %v326, 1.442695
    %v329 = vpow.pop %v328
    %v330 = vmul.f32 %v327, 1.442695
    %v331 = vpow.pop %v330
    %333 = vset.pattern.permute.xlu0 0
    %334 = vperm.xlu0 %333, %v324
    %v335 = vpop.permute.xlu0 %334
    %v337 = vlaneseq
    %v338 = vshrl.u32 %v337, 7
    %v339 = vsub.s32 0, %v338
    %v340 = vrot.slane %v335, %v339
    %342 = vset.pattern.permute.xlu0 0
    %343 = vperm.xlu0 %342, %v325
    %v344 = vpop.permute.xlu0 %343
    %v346 = vlaneseq
    %v347 = vshrl.u32 %v346, 7
    %v348 = vsub.s32 0, %v347
    %v349 = vrot.slane %v344, %v348
    %v350 = vsub.f32 %v313, %v340
    %v351 = vsub.f32 %v314, %v349
    %v352 = vmul.f32 %v350, 1.442695
    %v353 = vpow.pop %v352
    %v354 = vmul.f32 %v351, 1.442695
    %v355 = vpow.pop %v354
    %v356 = vsel %vm39, %v353, 0.0
    %v357 = vsel %vm39, %v355, 0.0
    %v358 = vld [vmem:[#allocation3] sm:$0x1]
    %v359 = vld [vmem:[#allocation3 + $0x1] sm:$0x1]
    %v360 = vmul.f32 %v329, %v358
    %v361 = vmul.f32 %v331, %v359
    %v362 = vsel %vm317, %v356, 0.0
    %363 = vadd.xlane.f32.xlu0 %v362
    %v364 = vpop.xlane.xlu0 %363
    %v365 = vsel %vm317, %v357, 0.0
    %366 = vadd.xlane.f32.xlu0 %v365
    %v367 = vpop.xlane.xlu0 %366
    %v368 = vadd.f32 %v360, %v364
    %v369 = vadd.f32 %v361, %v367
    %vm370 = vcmask 0
    %371 = vst.msk [vmem:[#allocation3] sm:$0x1] %vm370, %v368
    %372 = vst.msk [vmem:[#allocation3 + $0x1] sm:$0x1] %vm370, %v369
    %vm373 = vcmask 130048
    %v375 = vsel %vm373, %v356, 0
    %377 = vmatprep.subr.mxu0 0.0
    %378 = vmatpush1.msra.mxu0 %v55
    %379 = vmatprep.subr.mxu0 0.0
    %380 = vmatpush1.msra.mxu0 %v56
    %381 = vmatprep.subr.mxu0 0.0
    %382 = vmatpush1.msra.mxu0 0.0
    %383 = vmatprep.subr.mxu0 0.0
    %384 = vmatpush1.msra.mxu0 0.0
    %385 = vmatprep.subr.mxu0 0.0
    %386 = vmatpush1.msra.mxu0 0.0
    %387 = vmatprep.subr.mxu0 0.0
    %388 = vmatpush1.msra.mxu0 0.0
    %389 = vmatprep.subr.mxu0 0.0
    %390 = vmatpush1.msra.mxu0 0.0
    %391 = vmatprep.subr.mxu0 0.0
    %392 = vmatpush1.msra.mxu0 0.0
    %393 = vmatprep.subr.mxu0 0.0
    %394 = vmatpush1.msra.mxu0 0.0
    %395 = vmatprep.subr.mxu0 0.0
    %396 = vmatpush1.msra.mxu0 0.0
    %397 = vmatprep.subr.mxu0 0.0
    %398 = vmatpush1.msra.mxu0 0.0
    %399 = vmatprep.subr.mxu0 0.0
    %400 = vmatpush1.msra.mxu0 0.0
    %401 = vmatprep.subr.mxu0 0.0
    %402 = vmatpush1.msra.mxu0 0.0
    %403 = vmatprep.subr.mxu0 0.0
    %404 = vmatpush1.msra.mxu0 0.0
    %405 = vmatprep.subr.mxu0 0.0
    %406 = vmatpush1.msra.mxu0 0.0
    %407 = vmatprep.subr.mxu0 0.0
    %408 = vmatpush1.msra.mxu0 0.0
    %409 = vmatprep.subr.mxu0 0.0
    %410 = vmatpush1.msra.mxu0 0.0
    %411 = vmatprep.subr.mxu0 0.0
    %412 = vmatpush1.msra.mxu0 0.0
    %413 = vmatprep.subr.mxu0 0.0
    %414 = vmatpush1.msra.mxu0 0.0
    %415 = vmatprep.subr.mxu0 0.0
    %416 = vmatpush1.msra.mxu0 0.0
    %417 = vmatprep.subr.mxu0 0.0
    %418 = vmatpush1.msra.mxu0 0.0
    %419 = vmatprep.subr.mxu0 0.0
    %420 = vmatpush1.msra.mxu0 0.0
    %421 = vmatprep.subr.mxu0 0.0
    %422 = vmatpush1.msra.mxu0 0.0
    %423 = vmatprep.subr.mxu0 0.0
    %424 = vmatpush1.msra.mxu0 0.0
    %425 = vmatprep.subr.mxu0 0.0
    %426 = vmatpush1.msra.mxu0 0.0
    %427 = vmatprep.subr.mxu0 0.0
    %428 = vmatpush1.msra.mxu0 0.0
    %429 = vmatprep.subr.mxu0 0.0
    %430 = vmatpush1.msra.mxu0 0.0
    %431 = vmatprep.subr.mxu0 0.0
    %432 = vmatpush1.msra.mxu0 0.0
    %433 = vmatprep.subr.mxu0 0.0
    %434 = vmatpush1.msra.mxu0 0.0
    %435 = vmatprep.subr.mxu0 0.0
    %436 = vmatpush1.msra.mxu0 0.0
    %437 = vmatprep.subr.mxu0 0.0
    %438 = vmatpush1.msra.mxu0 0.0
    %439 = vmatprep.subr.mxu0 0.0
    %440 = vmatpush1.msra.mxu0 0.0
    %441 = vmatprep.mubr.f32.mxu0 0.0
    %442 = vmatmul.mubr.f32.gmra.mrb[0].mxu0 %v375
    %v443 = vpop.f32.mrb[0].mxu0
    %v444 = vadd.f32 0.0, %v443
    %v445 = vpop.f32.mrb[0].mxu0
    %446 = vdwg.mxu0
    %v448 = vsel %vm373, %v357, 0
    %450 = vmatprep.subr.mxu0 0.0
    %451 = vmatpush1.msra.mxu0 %v57
    %452 = vmatprep.subr.mxu0 0.0
    %453 = vmatpush1.msra.mxu0 %v58
    %454 = vmatprep.subr.mxu0 0.0
    %455 = vmatpush1.msra.mxu0 0.0
    %456 = vmatprep.subr.mxu0 0.0
    %457 = vmatpush1.msra.mxu0 0.0
    %458 = vmatprep.subr.mxu0 0.0
    %459 = vmatpush1.msra.mxu0 0.0
    %460 = vmatprep.subr.mxu0 0.0
    %461 = vmatpush1.msra.mxu0 0.0
    %462 = vmatprep.subr.mxu0 0.0
    %463 = vmatpush1.msra.mxu0 0.0
    %464 = vmatprep.subr.mxu0 0.0
    %465 = vmatpush1.msra.mxu0 0.0
    %466 = vmatprep.subr.mxu0 0.0
    %467 = vmatpush1.msra.mxu0 0.0
    %468 = vmatprep.subr.mxu0 0.0
    %469 = vmatpush1.msra.mxu0 0.0
    %470 = vmatprep.subr.mxu0 0.0
    %471 = vmatpush1.msra.mxu0 0.0
    %472 = vmatprep.subr.mxu0 0.0
    %473 = vmatpush1.msra.mxu0 0.0
    %474 = vmatprep.subr.mxu0 0.0
    %475 = vmatpush1.msra.mxu0 0.0
    %476 = vmatprep.subr.mxu0 0.0
    %477 = vmatpush1.msra.mxu0 0.0
    %478 = vmatprep.subr.mxu0 0.0
    %479 = vmatpush1.msra.mxu0 0.0
    %480 = vmatprep.subr.mxu0 0.0
    %481 = vmatpush1.msra.mxu0 0.0
    %482 = vmatprep.subr.mxu0 0.0
    %483 = vmatpush1.msra.mxu0 0.0
    %484 = vmatprep.subr.mxu0 0.0
    %485 = vmatpush1.msra.mxu0 0.0
    %486 = vmatprep.subr.mxu0 0.0
    %487 = vmatpush1.msra.mxu0 0.0
    %488 = vmatprep.subr.mxu0 0.0
    %489 = vmatpush1.msra.mxu0 0.0
    %490 = vmatprep.subr.mxu0 0.0
    %491 = vmatpush1.msra.mxu0 0.0
    %492 = vmatprep.subr.mxu0 0.0
    %493 = vmatpush1.msra.mxu0 0.0
    %494 = vmatprep.subr.mxu0 0.0
    %495 = vmatpush1.msra.mxu0 0.0
    %496 = vmatprep.subr.mxu0 0.0
    %497 = vmatpush1.msra.mxu0 0.0
    %498 = vmatprep.subr.mxu0 0.0
    %499 = vmatpush1.msra.mxu0 0.0
    %500 = vmatprep.subr.mxu0 0.0
    %501 = vmatpush1.msra.mxu0 0.0
    %502 = vmatprep.subr.mxu0 0.0
    %503 = vmatpush1.msra.mxu0 0.0
    %504 = vmatprep.subr.mxu0 0.0
    %505 = vmatpush1.msra.mxu0 0.0
    %506 = vmatprep.subr.mxu0 0.0
    %507 = vmatpush1.msra.mxu0 0.0
    %508 = vmatprep.subr.mxu0 0.0
    %509 = vmatpush1.msra.mxu0 0.0
    %510 = vmatprep.subr.mxu0 0.0
    %511 = vmatpush1.msra.mxu0 0.0
    %512 = vmatprep.subr.mxu0 0.0
    %513 = vmatpush1.msra.mxu0 0.0
    %514 = vmatprep.mubr.f32.mxu0 0.0
    %515 = vmatmul.mubr.f32.gmra.mrb[0].mxu0 %v448
    %v516 = vpop.f32.mrb[0].mxu0
    %v517 = vadd.f32 0.0, %v516
    %v518 = vpop.f32.mrb[0].mxu0
    %519 = vdwg.mxu0
    %v520 = vld [vmem:[#allocation4] sm:$0x1]
    %v521 = vld [vmem:[#allocation4 + $0x1] sm:$0x1]
    %523 = vset.pattern.permute.xlu0 0
    %524 = vperm.xlu0 %523, %v329
    %v525 = vpop.permute.xlu0 %524
    %v527 = vlaneseq
    %v528 = vshrl.u32 %v527, 7
    %v529 = vsub.s32 0, %v528
    %v530 = vrot.slane %v525, %v529
    %532 = vset.pattern.permute.xlu0 0
    %533 = vperm.xlu0 %532, %v331
    %v534 = vpop.permute.xlu0 %533
    %v536 = vlaneseq
    %v537 = vshrl.u32 %v536, 7
    %v538 = vsub.s32 0, %v537
    %v539 = vrot.slane %v534, %v538
    %v540 = vmul.f32 %v530, %v520
    %v541 = vmul.f32 %v539, %v521
    %v542 = vadd.f32 %v540, %v444
    %v543 = vadd.f32 %v541, %v517
    %vm544 = vcmask 253952
    %545 = vst.msk [vmem:[#allocation4] sm:$0x1] %vm544, %v542
    %546 = vst.msk [vmem:[#allocation4 + $0x1] sm:$0x1] %vm544, %v543
    %547 = vst.msk [vmem:[#allocation2] sm:$0x1] %vm370, %v324
    %548 = vst.msk [vmem:[#allocation2 + $0x1] sm:$0x1] %vm370, %v325
    // Predicated region
    $region22: #{tpu_custom_call.1} parent=1 // pred_check
      %p549 = pneg %p21
    $region23: #{tpu_custom_call.1} parent=1 // pred_check_branch
      %551 = sbr.rel (%p549) target = $region25
    $region24: #{tpu_custom_call.1} parent=1 // pred_region
      %v552 = vld [vmem:[#allocation4] sm:$0x1]
      %v553 = vld [vmem:[#allocation4 + $0x1] sm:$0x1]
      %v554 = vld [vmem:[#allocation3] sm:$0x1]
      %v555 = vld [vmem:[#allocation3 + $0x1] sm:$0x1]
      %v556 = vrcp.pop %v554
      %v557 = vrcp.pop %v555
      %559 = vset.pattern.permute.xlu0 0
      %560 = vperm.xlu0 %559, %v556
      %v561 = vpop.permute.xlu0 %560
      %v563 = vlaneseq
      %v564 = vshrl.u32 %v563, 7
      %v565 = vsub.s32 0, %v564
      %v566 = vrot.slane %v561, %v565
      %568 = vset.pattern.permute.xlu0 0
      %569 = vperm.xlu0 %568, %v557
      %v570 = vpop.permute.xlu0 %569
      %v572 = vlaneseq
      %v573 = vshrl.u32 %v572, 7
      %v574 = vsub.s32 0, %v573
      %v575 = vrot.slane %v570, %v574
      %v576 = vmul.f32 %v552, %v566
      %v577 = vmul.f32 %v553, %v575
      %v580 = vcombine.low %v576, %v577
      %v582 = vunpack.c.l.s4 1966171168
      %v583 = vunpack.c.0.s8 %v582
      %v584 = vlaneseq
      %v585 = vshrl.u32 %v584, 7
      %v586 = vsub.s32 %v583, %v585
      %v587 = vrot.slane %v580, %v586
      %v589 = vunpack.c.l.s4 1966171168
      %v590 = vunpack.c.0.s8 %v589
      %v591 = vlaneseq
      %v592 = vshrl.u32 %v591, 7
      %v593 = vsub.s32 %v590, %v592
      %v594 = vrot.slane %v587, %v593
      %vm596 = vcmask 254976
      %597 = vst.msk [vmem:[#allocation7] sm:$0x3] %vm596, %v594
    $region25: #{tpu_custom_call.1} parent=1 // pred_fallthru
      _
    // Predicated region
    $region26: #{tpu_custom_call.1} parent=1 // pred_check
      _
    $region27: #{tpu_custom_call.1} parent=1 // pred_check_branch
      %599 = sbr.rel (0) target = $region29
    $region28: #{tpu_custom_call.1} parent=1 // pred_region
      %s601 = ssub.s32 32, 32
      %602 = vsyncadd [#allocation8], %s601
      %s604 = sshll.u32 [#allocation7], 4
      %s605 = int_to_ptr.vmem [resolvable:$true] %s604
      %607 = dma.vmem_to_hbm [thread:$0]  %s605, 32, %s5, [#allocation8]
    $region29: #{tpu_custom_call.1} parent=1 // pred_fallthru
      _
    // Predicated region
    $region30: #{tpu_custom_call.1} parent=1 // pred_check
      _
    $region31: #{tpu_custom_call.1} parent=1 // pred_check_branch
      %609 = sbr.rel (0) target = $region33
    $region32: #{tpu_custom_call.1} parent=1 // pred_region
      %610 = dma.done [#allocation8], 32
    $region33: #{tpu_custom_call.1} parent=1 // pred_fallthru
      _
    %611 = vsyncpa [#allocation8], 1

</llo_original>
